<compile_context>
chip_gen: v7x
topology: tpu7x:2x2x1
jax: 0.10.0
libtpu: 0.0.40
codegen_flags: <defaults>
</compile_context>

<pallas_src>
import functools

import jax
import jax.numpy as jnp
import numpy as np
from jax.experimental import pallas as pl
from jax.experimental.pallas import tpu as pltpu

# The 90 transposable 2:4 mask patterns for a flattened 4x4 tile (row-major).
_PATTERN_STRINGS = [
    "1100110000110011", "1100101001010011", "1100101000110101", "1100100101100011",
    "1100100100110110", "1100011010010011", "1100011000111001", "1100010110100011",
    "1100010100111010", "1100001111000011", "1100001110100101", "1100001110010110",
    "1100001101101001", "1100001101011010", "1100001100111100", "1010110001010011",
    "1010110000110101", "1010101001010101", "1010100101100101", "1010100101010110",
    "1010011010010101", "1010011001011001", "1010010111000011", "1010010110100101",
    "1010010110010110", "1010010101101001", "1010010101011010", "1010010100111100",
    "1010001111000101", "1010001101011100", "1001110001100011", "1001110000110110",
    "1001101001100101", "1001101001010110", "1001100101100110", "1001011011000011",
    "1001011010100101", "1001011010010110", "1001011001101001", "1001011001011010",
    "1001011000111100", "1001010110100110", "1001010101101010", "1001001111000110",
    "1001001101101100", "0110110010010011", "0110110000111001", "0110101010010101",
    "0110101001011001", "0110100111000011", "0110100110100101", "0110100110010110",
    "0110100101101001", "0110100101011010", "0110100100111100", "0110011010011001",
    "0110010110101001", "0110010110011010", "0110001111001001", "0110001110011100",
    "0101110010100011", "0101110000111010", "0101101011000011", "0101101010100101",
    "0101101010010110", "0101101001101001", "0101101001011010", "0101101000111100",
    "0101100110100110", "0101100101101010", "0101011010101001", "0101011010011010",
    "0101010110101010", "0101001111001010", "0101001110101100", "0011110011000011",
    "0011110010100101", "0011110010010110", "0011110001101001", "0011110001011010",
    "0011110000111100", "0011101011000101", "0011101001011100", "0011100111000110",
    "0011100101101100", "0011011011001001", "0011011010011100", "0011010111001010",
    "0011010110101100", "0011001111001100",
]
N_PATTERNS = len(_PATTERN_STRINGS)   # 90
PAT_ROWS = 96                        # padded to a multiple of the bf16 sublane tile


def _pattern_tables():
    """(96,16) bf16 pattern matrix and (96,1) int32 key table.

    key[p] = (p << 16) | packed_bits(p)  where bit j of packed_bits is pattern[j].
    Padding rows (90..95) duplicate row 0, so they can never exceed the true max
    score, and they carry row 0's key so a tie never changes the result.
    """
    pat = np.zeros((PAT_ROWS, 16), np.float32)
    code = np.zeros((PAT_ROWS, 1), np.int64)
    for i, s in enumerate(_PATTERN_STRINGS):
        pat[i] = [int(c) for c in s]
        code[i, 0] = (i << 16) | int(s[::-1], 2)      # bit j = int(s[j])
    pat[N_PATTERNS:] = pat[0]
    code[N_PATTERNS:] = code[0]
    return jnp.asarray(pat, jnp.bfloat16), jnp.asarray(code, jnp.int32)


def _tsp_pack_kernel(tiles_ref, pat_ref, code_ref, packed_ref, *, abs_flag):
    """For each of TT 4x4 tiles (tile index on lanes), emit the packed 16-bit
    winning transposable-2:4 pattern as an int32."""
    tiles = tiles_ref[...]                               # (16, TT) bf16
    # NB: mirrors the original Triton code exactly: abs=True scores the raw
    # values, abs=False scores absolute values (inverted w.r.t. the name).
    vals = tiles if abs_flag else jnp.abs(tiles)

    # scores[p, t] = <pattern_p, tile_t>   (bf16 x bf16 -> f32 on the MXU)
    scores = jnp.dot(pat_ref[...], vals,
                     preferred_element_type=jnp.float32)  # (96, TT)

    best = jnp.max(scores, axis=0, keepdims=True)         # (1, TT)
    # argmax with first-occurrence tie-break == min over key rows that hit the max.
    key = jnp.where(scores >= best, code_ref[...], jnp.int32(2 ** 30))  # (96, TT)
    packed_ref[...] = jnp.min(key, axis=0, keepdims=True) & 0xFFFF      # (1, TT)


def _choose_block_tiles(T, cap=8192):
    """Largest multiple of 128 dividing T (capped); prefer >= 2 grid steps."""
    tt = max(128, min(T, cap) - (min(T, cap) % 128))
    while T % tt:
        tt -= 128
    if T // tt < 2 and T > 128:                 # keep both v7x TensorCores busy
        half = max(128, (T // 2) - ((T // 2) % 128))
        if T % half == 0:
            tt = half
    return tt


@functools.partial(jax.jit, static_argnames=("abs_flag", "block_tiles"))
def transposable_sparse(x, abs_flag=True, block_tiles=None):
    """Equivalent of TransposableSparse(abs=abs_flag)(x).

    x: (m, k) float (fp16/bf16/f32), m % 32 == 0, k % 64 == 0.
    Returns (sparse, mask): sparse has x's dtype with exact kept values,
    mask is bool, both (m, k).
    """
    m, k = x.shape
    if m % 32 != 0 or k % 64 != 0:
        raise RuntimeError("m must be divisible by 32 and k by 64")

    T = (m // 4) * (k // 4)                     # number of 4x4 tiles (multiple of 128)
    TT = block_tiles if block_tiles is not None else _choose_block_tiles(T)

    # Tile-flatten to (16, T): tiles[4*dr+dc, tr*(k//4)+tc] = x[4*tr+dr, 4*tc+dc].
    # The bf16 cast fuses into this transpose so the kernel reads 2 B/elem.
    # TODO(synk): fold this single remaining XLA transpose pass into the kernel
    # (in-register 4x4 regroup) once the Mosaic relayout for it is dependable.
    tiles = (x.astype(jnp.bfloat16)
             .reshape(m // 4, 4, k // 4, 4)
             .transpose(1, 3, 0, 2)
             .reshape(16, T))

    pat, code = _pattern_tables()               # (96,16) bf16, (96,1) int32

    packed = pl.pallas_call(
        functools.partial(_tsp_pack_kernel, abs_flag=abs_flag),
        out_shape=jax.ShapeDtypeStruct((1, T), jnp.int32),
        grid_spec=pltpu.PrefetchScalarGridSpec(
            num_scalar_prefetch=0,
            grid=(T // TT,),
            in_specs=[
                pl.BlockSpec((16, TT), lambda i: (0, i)),
                # Pattern/key tables: constant block index -> DMA'd once, resident.
                pl.BlockSpec((PAT_ROWS, 16), lambda i: (0, 0)),
                pl.BlockSpec((PAT_ROWS, 1), lambda i: (0, 0)),
            ],
            out_specs=pl.BlockSpec((1, TT), lambda i: (0, i)),
        ),
        compiler_params=pltpu.CompilerParams(
            dimension_semantics=("parallel",),
            vmem_limit_bytes=48 * 1024 * 1024),
    )(tiles, pat, code)

    # Unpack the 16 bits per tile straight back to (m, k).  All reshapes below are
    # layout-free (row-major compatible), so this tail is a single elementwise
    # XLA fusion reading `packed` + `x` -- no un-tile transpose pass over HBM.
    shifts = (4 * jnp.arange(4, dtype=jnp.int32)[:, None]
              + jnp.arange(4, dtype=jnp.int32)[None, :])        # (4, 4): 4*dr + dc
    packed2d = packed.reshape(m // 4, k // 4)
    bits = (packed2d[:, None, :, None] >> shifts[None, :, None, :]) & 1
    mask = bits.reshape(m, k) != 0
    # Kept entries retain their exact input (e.g. fp16) bits.
    sparse = jnp.where(mask, x, jnp.zeros_like(x))
    return sparse, mask


def _reference(x, abs_flag=True):
    """Pure-JAX reference of the Triton semantics (same bf16 scoring path)."""
    m, k = x.shape
    T = (m // 4) * (k // 4)
    pat_np = np.zeros((N_PATTERNS, 16), np.float32)
    for i, s in enumerate(_PATTERN_STRINGS):
        pat_np[i] = [int(c) for c in s]
    pat_bf = jnp.asarray(pat_np, jnp.bfloat16)                            # (90, 16)
    tiles = (x.astype(jnp.bfloat16)
             .reshape(m // 4, 4, k // 4, 4)
             .transpose(1, 3, 0, 2)
             .reshape(16, T))
    vals = tiles if abs_flag else jnp.abs(tiles)
    scores = jnp.dot(pat_bf, vals, preferred_element_type=jnp.float32)    # (90, T)
    best = jnp.argmax(scores, axis=0)                                     # (T,)
    mask_t = jnp.asarray(pat_np, jnp.float32)[best].T > 0.5               # (16, T)
    mask = (mask_t.reshape(4, 4, m // 4, k // 4)
            .transpose(2, 0, 3, 1)
            .reshape(m, k))
    sparse = jnp.where(mask, x, jnp.zeros_like(x))
    return sparse, mask


if __name__ == "__main__":
    key = jax.random.PRNGKey(0)
    for (m, k, abs_flag) in [(64, 128, True), (32, 64, False)]:
        key, sub = jax.random.split(key)
        x = jax.random.normal(sub, (m, k), dtype=jnp.float32).astype(jnp.float16)

        sparse, mask = transposable_sparse(x, abs_flag=abs_flag)
        jax.block_until_ready((sparse, mask))

        sparse_ref, mask_ref = _reference(x, abs_flag=abs_flag)
        np.testing.assert_array_equal(np.asarray(mask), np.asarray(mask_ref))
        np.testing.assert_array_equal(np.asarray(sparse), np.asarray(sparse_ref))

        # Sanity: kept values are exactly the inputs, zeros elsewhere.
        np.testing.assert_array_equal(
            np.asarray(sparse), np.where(np.asarray(mask), np.asarray(x), 0))

        # Sanity: every 4x4 tile keeps exactly 8 elements, 2 per row & column.
        mt = np.asarray(mask).reshape(m // 4, 4, k // 4, 4).transpose(0, 2, 1, 3)
        assert (mt.sum(axis=(2, 3)) == 8).all()
        assert (mt.sum(axis=3) == 2).all() and (mt.sum(axis=2) == 2).all()

    print("KERNEL_OK")
</pallas_src>

<mosaic_0001>
module attributes {stable_mosaic.version = 11 : i64} {
  func.func @_tsp_pack_kernel(%arg0: i32, %arg1: memref<16x256xbf16, #tpu.memory_space<vmem>>, %arg2: memref<96x16xbf16, #tpu.memory_space<vmem>>, %arg3: memref<96x1xi32, #tpu.memory_space<vmem>>, %arg4: memref<1x256xi32, #tpu.memory_space<vmem>>) attributes {dimension_semantics = [#tpu.dimension_semantics<parallel>], iteration_bounds = array<i64: 2>, scalar_prefetch = 0 : i64, scratch_operands = 0 : i64, tpu.core_type = #tpu.core_type<tc>, window_params = [{transform_indices = @transform_0, window_bounds = array<i64: 16, 256>}, {pipeline_mode = #tpu.pipeline_mode<synchronous>, transform_indices = @transform_1, window_bounds = array<i64: 96, 16>}, {pipeline_mode = #tpu.pipeline_mode<synchronous>, transform_indices = @transform_2, window_bounds = array<i64: 96, 1>}, {transform_indices = @transform_3, window_bounds = array<i64: 1, 256>}]} {
    %c0 = arith.constant 0 : index
    %c0_0 = arith.constant 0 : index
    %0 = vector.load %arg1[%c0, %c0_0] : memref<16x256xbf16, #tpu.memory_space<vmem>>, vector<16x256xbf16>
    %c0_1 = arith.constant 0 : index
    %c0_2 = arith.constant 0 : index
    %1 = vector.load %arg2[%c0_1, %c0_2] : memref<96x16xbf16, #tpu.memory_space<vmem>>, vector<96x16xbf16>
    %cst = arith.constant dense<0.000000e+00> : vector<96x256xf32>
    %2 = tpu.matmul %1, %0, %cst {dimension_numbers = #tpu.dot_dimension_numbers<[1], [0], [0], [1], [0, 0, 1, 1], [], []>} : vector<96x16xbf16>, vector<16x256xbf16>, vector<96x256xf32> -> vector<96x256xf32>
    %cst_3 = arith.constant dense<0xFF800000> : vector<256xf32>
    %3 = vector.multi_reduction <maximumf>, %2, %cst_3 [0] : vector<96x256xf32> to vector<256xf32>
    %4 = vector.shape_cast %3 : vector<256xf32> to vector<1x256xf32>
    %5 = vector.broadcast %4 : vector<1x256xf32> to vector<96x256xf32>
    %6 = arith.cmpf oge, %2, %5 : vector<96x256xf32>
    %c0_4 = arith.constant 0 : index
    %c0_5 = arith.constant 0 : index
    %7 = vector.load %arg3[%c0_4, %c0_5] : memref<96x1xi32, #tpu.memory_space<vmem>>, vector<96x1xi32>
    %c1073741824_i32 = arith.constant 1073741824 : i32
    %8 = vector.shape_cast %7 : vector<96x1xi32> to vector<96x1xi32>
    %9 = vector.broadcast %8 : vector<96x1xi32> to vector<96x256xi32>
    %10 = vector.broadcast %c1073741824_i32 : i32 to vector<96x256xi32>
    %11 = arith.select %6, %9, %10 : vector<96x256xi1>, vector<96x256xi32>
    %cst_6 = arith.constant dense<2147483647> : vector<256xi32>
    %12 = vector.multi_reduction <minsi>, %11, %cst_6 [0] : vector<96x256xi32> to vector<256xi32>
    %13 = vector.shape_cast %12 : vector<256xi32> to vector<1x256xi32>
    %c65535_i32 = arith.constant 65535 : i32
    %14 = vector.broadcast %c65535_i32 : i32 to vector<1x256xi32>
    %15 = arith.andi %13, %14 : vector<1x256xi32>
    %c0_7 = arith.constant 0 : index
    %c0_8 = arith.constant 0 : index
    %16 = vector.load %arg4[%c0_7, %c0_8] : memref<1x256xi32, #tpu.memory_space<vmem>>, vector<1x256xi32>
    tpu.vector_store %arg4[%c0_7, %c0_8], %15 {strides = array<i32>} : memref<1x256xi32, #tpu.memory_space<vmem>>, vector<1x256xi32>,
    return
  }
  func.func @transform_0(%arg0: i32) -> (i32, i32) {
    %c0_i32 = arith.constant 0 : i32
    %c0_i32_0 = arith.constant 0 : i32
    return %c0_i32, %arg0 : i32, i32
  }
  func.func @transform_1(%arg0: i32) -> (i32, i32) {
    %c0_i32 = arith.constant 0 : i32
    %c0_i32_0 = arith.constant 0 : i32
    %c0_i32_1 = arith.constant 0 : i32
    return %c0_i32, %c0_i32_0 : i32, i32
  }
  func.func @transform_2(%arg0: i32) -> (i32, i32) {
    %c0_i32 = arith.constant 0 : i32
    %c0_i32_0 = arith.constant 0 : i32
    %c0_i32_1 = arith.constant 0 : i32
    return %c0_i32, %c0_i32_0 : i32, i32
  }
  func.func @transform_3(%arg0: i32) -> (i32, i32) {
    %c0_i32 = arith.constant 0 : i32
    %c0_i32_0 = arith.constant 0 : i32
    return %c0_i32, %arg0 : i32, i32
  }
}

</mosaic_0001>

<llo_original>
// kernel: transposable_sparse.1
$region0: #{transposable_sparse.1}
  #allocation0 [shape = 'u32[]', space=smem, size = 0x4, offset = 0x4, fixed_abs, tag = 'smem constant byte address 0x4 - core index']
  #allocation1 [shape = 'u32[144,128]{1,0:T(1,128)}', space=vmem, size = 0x12000, scoped, tag = 'internal scratch']
  %s0 = inlined_call_operand.vmem [shape: bf16[16,512], index: 0, kind: input, shape index: {}]
  %s1 = inlined_call_operand.vmem [shape: bf16[96,16], index: 1, kind: input, shape index: {}]
  %s2 = inlined_call_operand.vmem [shape: s32[96,1], index: 2, kind: input, shape index: {}]
  %s3 = inlined_call_operand.vmem [shape: s32[1,512], index: 3, kind: output, shape index: {}]
  %s4 = sld [smem:[#allocation0]]
  $region83: #{transposable_sparse.1} parent=0
    _
  %s6 = ssub.s32 1, %s4
  %s7 = scalar_select 0, %s6, %s4
  $region1: #{transposable_sparse.1} parent=0
    #allocation2 [shape = 'u8[16384]{0}', space=vmem, size = 0x4000, scoped, tag = 'input window, operand 0']
    loop: start=0, step=1, limit=4
    $region2: #{transposable_sparse.1} parent=1 // loop_pre_header
      _
    $region3: #{transposable_sparse.1} parent=1 // loop_header
      %s9 = sphi 0, %s13
      %p10 = scmp.ge.s32.totalorder %s9, 4
      %s19 = sphi 0, %s21
      %s22 = sphi 0, %s19
      %s23 = sphi 0, %s22
      %s39 = sphi 0, %s23
      %s43 = sphi 0, %s43
      %s45 = sphi 0, %s43
      %s46 = sphi 0, %s45
      %s60 = sphi 0, %s46
      %s64 = sphi 0, %s64
      %s66 = sphi 0, %s64
      %s67 = sphi 0, %s66
      %s81 = sphi 0, %s67
      %s87 = sphi 0, %s89
      %s90 = sphi 0, %s87
      %s91 = sphi 0, %s90
      %s107 = sphi 0, %s91
    $region4: #{transposable_sparse.1} parent=1 // loop_header_branch
      %12 = sbr.rel (%p10) target = $region8
    $region5: #{transposable_sparse.1} parent=1 // loop_body
      %s14 = ssub.s32 %s9, 1
      %s15 = ssub.s32 %s9, 2
      %s16 = sadd.s32 %s9, 1
      %s17 = ssub.s32 %s9, %s16
      %p18 = scmp.eq.s32.totalorder %s17, 0
      %s20 = sadd.s32 %s19, 1
      %s21 = scalar_select %p18, %s19, %s20
      %p24 = pneg %p18
      %p25 = scmp.eq.s32.totalorder %s9, 1
      %p26 = por %p24, %p25
      %p27 = scmp.ne.s32.totalorder %s19, %s22
      %p28 = scmp.eq.s32.totalorder %s9, 0
      %p29 = por %p27, %p28
      %p30 = scmp.ne.s32.totalorder %s19, %s22
      %p31 = scmp.eq.s32.totalorder %s14, 1
      %p32 = por %p30, %p31
      %p33 = scmp.ne.s32.totalorder %s22, %s23
      %p34 = scmp.eq.s32.totalorder %s14, 0
      %p35 = por %p33, %p34
      %p36 = scmp.ne.s32.totalorder %s22, %s23
      %p37 = scmp.eq.s32.totalorder %s15, 1
      %p38 = por %p36, %p37
      %p40 = scmp.ne.s32.totalorder %s23, %s39
      %p41 = scmp.eq.s32.totalorder %s15, 0
      %p42 = por %p40, %p41
      %s44 = sadd.s32 %s43, 1
      %p47 = scmp.eq.s32.totalorder %s9, 1
      %p48 = scmp.ne.s32.totalorder %s43, %s45
      %p49 = scmp.eq.s32.totalorder %s9, 0
      %p50 = por %p48, %p49
      %p51 = scmp.ne.s32.totalorder %s43, %s45
      %p52 = scmp.eq.s32.totalorder %s14, 1
      %p53 = por %p51, %p52
      %p54 = scmp.ne.s32.totalorder %s45, %s46
      %p55 = scmp.eq.s32.totalorder %s14, 0
      %p56 = por %p54, %p55
      %p57 = scmp.ne.s32.totalorder %s45, %s46
      %p58 = scmp.eq.s32.totalorder %s15, 1
      %p59 = por %p57, %p58
      %p61 = scmp.ne.s32.totalorder %s46, %s60
      %p62 = scmp.eq.s32.totalorder %s15, 0
      %p63 = por %p61, %p62
      %s65 = sadd.s32 %s64, 1
      %p68 = scmp.eq.s32.totalorder %s9, 1
      %p69 = scmp.ne.s32.totalorder %s64, %s66
      %p70 = scmp.eq.s32.totalorder %s9, 0
      %p71 = por %p69, %p70
      %p72 = scmp.ne.s32.totalorder %s64, %s66
      %p73 = scmp.eq.s32.totalorder %s14, 1
      %p74 = por %p72, %p73
      %p75 = scmp.ne.s32.totalorder %s66, %s67
      %p76 = scmp.eq.s32.totalorder %s14, 0
      %p77 = por %p75, %p76
      %p78 = scmp.ne.s32.totalorder %s66, %s67
      %p79 = scmp.eq.s32.totalorder %s15, 1
      %p80 = por %p78, %p79
      %p82 = scmp.ne.s32.totalorder %s67, %s81
      %p83 = scmp.eq.s32.totalorder %s15, 0
      %p84 = por %p82, %p83
      %s85 = ssub.s32 %s9, %s16
      %p86 = scmp.eq.s32.totalorder %s85, 0
      %s88 = sadd.s32 %s87, 1
      %s89 = scalar_select %p86, %s87, %s88
      %p92 = pneg %p86
      %p93 = scmp.eq.s32.totalorder %s9, 1
      %p94 = por %p92, %p93
      %p95 = scmp.ne.s32.totalorder %s87, %s90
      %p96 = scmp.eq.s32.totalorder %s9, 0
      %p97 = por %p95, %p96
      %p98 = scmp.ne.s32.totalorder %s87, %s90
      %p99 = scmp.eq.s32.totalorder %s14, 1
      %p100 = por %p98, %p99
      %p101 = scmp.ne.s32.totalorder %s90, %s91
      %p102 = scmp.eq.s32.totalorder %s14, 0
      %p103 = por %p101, %p102
      %p104 = scmp.ne.s32.totalorder %s90, %s91
      %p105 = scmp.eq.s32.totalorder %s15, 1
      %p106 = por %p104, %p105
      %p108 = scmp.ne.s32.totalorder %s91, %s107
      %p109 = scmp.eq.s32.totalorder %s15, 0
      %p110 = por %p108, %p109
      %p111 = scmp.le.s32.totalorder 1, %s9
      %p112 = scmp.lt.s32.totalorder %s9, 3
      %p113 = pnand %p111, %p112
      %p114 = pneg %p113
      // Predicated region
      $region9: #{transposable_sparse.1} parent=5 // pred_check
        _
      $region10: #{transposable_sparse.1} parent=5 // pred_check_branch
        %116 = sbr.rel (%p113) target = $region12
      $region11: #{transposable_sparse.1} parent=5 // pred_region
        %s117 = ssub.s32 %s9, 1
        // Predicated region
        $region13: #{transposable_sparse.1} parent=11 // pred_check
          %p118 = pneg %p56
        $region14: #{transposable_sparse.1} parent=11 // pred_check_branch
          %120 = sbr.rel (%p118) target = $region16
        $region15: #{transposable_sparse.1} parent=11 // pred_region
          _
        $region16: #{transposable_sparse.1} parent=11 // pred_fallthru
          _
        // Predicated region
        $region17: #{transposable_sparse.1} parent=11 // pred_check
          %p121 = pneg %p77
        $region18: #{transposable_sparse.1} parent=11 // pred_check_branch
          %123 = sbr.rel (%p121) target = $region20
        $region19: #{transposable_sparse.1} parent=11 // pred_region
          _
        $region20: #{transposable_sparse.1} parent=11 // pred_fallthru
          _
      $region12: #{transposable_sparse.1} parent=5 // pred_fallthru
        _
      %p124 = scmp.lt.s32.totalorder %s9, 2
      // Predicated region
      $region21: #{transposable_sparse.1} parent=5 // pred_check
        %p125 = pneg %p124
      $region22: #{transposable_sparse.1} parent=5 // pred_check_branch
        %127 = sbr.rel (%p125) target = $region24
      $region23: #{transposable_sparse.1} parent=5 // pred_region
        // Predicated region
        $region25: #{transposable_sparse.1} parent=23 // pred_check
          %p128 = pneg %p29
        $region26: #{transposable_sparse.1} parent=23 // pred_check_branch
          %130 = sbr.rel (%p128) target = $region28
        $region27: #{transposable_sparse.1} parent=23 // pred_region
          %s131 = sand.u32 %s19, 1
          %s132 = sand.u32 %s19, 1
          %s133 = smul.addr %s132, 16
          %s134 = scalar_lea.vmem [#allocation2], %s133
          %s135 = smul.u32 2, %s9
          %s136 = smul.addr %s135, 4
          %s137 = scalar_lea.vmem %s0, %s136
          // Predicated region
          $region29: #{transposable_sparse.1} parent=27 // pred_check
            _
          $region30: #{transposable_sparse.1} parent=27 // pred_check_branch
            %139 = sbr.rel (0) target = $region32
          $region31: #{transposable_sparse.1} parent=27 // pred_region
            // Predicated region
            $region33: #{transposable_sparse.1} parent=31 // pred_check
              _
            $region34: #{transposable_sparse.1} parent=31 // pred_check_branch
              %141 = sbr.rel (0) target = $region36
            $region35: #{transposable_sparse.1} parent=31 // pred_region
              // Predicated region
              $region48: #{transposable_sparse.1} parent=35 // pred_check
                _
              $region49: #{transposable_sparse.1} parent=35 // pred_check_branch
                %158 = sbr.rel (0) target = $region51
              $region50: #{transposable_sparse.1} parent=35 // pred_region
                loop: start=0, step=1, limit=1
                $region52: #{transposable_sparse.1} parent=50 // loop_pre_header
                  _
                $region53: #{transposable_sparse.1} parent=50 // loop_header
                  %s160 = sphi 0, %s164
                  %p161 = scmp.ge.s32.totalorder %s160, 1
                  %s165 = sphi %s137, %s137
                  %s166 = sphi %s134, %s134
                $region54: #{transposable_sparse.1} parent=50 // loop_header_branch
                  %163 = sbr.rel (%p161) target = $region58
                $region55: #{transposable_sparse.1} parent=50 // loop_body
                  %v167 = vld [vmem:[%s165] sm:$0xff]
                  %168 = vst [vmem:[%s166] sm:$0xff] %v167
                  %v169 = vld [vmem:[%s165 + $0x10] sm:$0xff]
                  %170 = vst [vmem:[%s166 + $0x8] sm:$0xff] %v169
                $region56: #{transposable_sparse.1} parent=50 // loop_footer
                  %s164 = sadd.s32 1, %s160
                $region57: #{transposable_sparse.1} parent=50 // loop_footer_branch
                  %159 = sbr.rel target = $region53
                $region58: #{transposable_sparse.1} parent=50 // loop_exit
                  _
              $region51: #{transposable_sparse.1} parent=35 // pred_fallthru
                _
              // Predicated region
              $region59: #{transposable_sparse.1} parent=35 // pred_check
                _
              $region60: #{transposable_sparse.1} parent=35 // pred_check_branch
                %172 = sbr.rel target = $region62
              $region61: #{transposable_sparse.1} parent=35 // pred_region
                _
              $region62: #{transposable_sparse.1} parent=35 // pred_fallthru
                _
            $region36: #{transposable_sparse.1} parent=31 // pred_fallthru
              _
            // Predicated region
            $region37: #{transposable_sparse.1} parent=31 // pred_check
              _
            $region38: #{transposable_sparse.1} parent=31 // pred_check_branch
              %143 = sbr.rel target = $region40
            $region39: #{transposable_sparse.1} parent=31 // pred_region
              loop: start=0, step=1, limit=1
              $region41: #{transposable_sparse.1} parent=39 // loop_pre_header
                _
              $region42: #{transposable_sparse.1} parent=39 // loop_header
                %s146 = sphi 0, %s150
                %p147 = scmp.ge.s32.totalorder %s146, 1
                %s151 = sphi %s137, %s137
                %s152 = sphi %s134, %s134
              $region43: #{transposable_sparse.1} parent=39 // loop_header_branch
                %149 = sbr.rel (%p147) target = $region47
              $region44: #{transposable_sparse.1} parent=39 // loop_body
                %v153 = vld [vmem:[%s151] sm:$0xff]
                %154 = vst [vmem:[%s152] sm:$0xff] %v153
                %v155 = vld [vmem:[%s151 + $0x10] sm:$0xff]
                %156 = vst [vmem:[%s152 + $0x8] sm:$0xff] %v155
              $region45: #{transposable_sparse.1} parent=39 // loop_footer
                %s150 = sadd.s32 1, %s146
              $region46: #{transposable_sparse.1} parent=39 // loop_footer_branch
                %145 = sbr.rel target = $region42
              $region47: #{transposable_sparse.1} parent=39 // loop_exit
                _
            $region40: #{transposable_sparse.1} parent=31 // pred_fallthru
              _
          $region32: #{transposable_sparse.1} parent=27 // pred_fallthru
            _
          %173 = vnop
        $region28: #{transposable_sparse.1} parent=23 // pred_fallthru
          _
      $region24: #{transposable_sparse.1} parent=5 // pred_fallthru
        _
      %p174 = scmp.le.s32.totalorder 1, %s9
      %p175 = scmp.lt.s32.totalorder %s9, 3
      %p176 = pnand %p174, %p175
      %p177 = pneg %p176
      // Predicated region
      $region63: #{transposable_sparse.1} parent=5 // pred_check
        _
      $region64: #{transposable_sparse.1} parent=5 // pred_check_branch
        %179 = sbr.rel (%p176) target = $region66
      $region65: #{transposable_sparse.1} parent=5 // pred_region
        %s180 = ssub.s32 %s9, 1
        %s181 = sand.u32 %s22, 1
        %s182 = sand.u32 %s22, 1
        %s183 = smul.addr %s182, 16
        %s184 = scalar_lea.vmem [#allocation2], %s183
        // Predicated region
        $region67: #{transposable_sparse.1} parent=65 // pred_check
          %p185 = pneg %p35
        $region68: #{transposable_sparse.1} parent=65 // pred_check_branch
          %187 = sbr.rel (%p185) target = $region70
        $region69: #{transposable_sparse.1} parent=65 // pred_region
          _
        $region70: #{transposable_sparse.1} parent=65 // pred_fallthru
          _
        %s188 = sand.u32 %s22, 1
        %s189 = sand.u32 %s22, 1
        %s190 = smul.addr %s189, 16
        %s191 = scalar_lea.vmem [#allocation2], %s190
        %p192 = pneg %p35
        %p193 = pneg %p32
        %p194 = pneg %p56
        %p195 = pneg %p53
        %p196 = pneg %p77
        %p197 = pneg %p74
        %p198 = pneg %p103
        %p199 = pneg %p100
        %s200 = smul.u32 2, %s14
        %p201 = scmp.lt.s32.totalorder %s200, 3
        %s202 = scalar_select %p201, %s200, 3
        %s203 = scalar_lea.vmem %s3, %s202
        %s204 = smul.u32 2, %s14
        %s205 = smul.u32 2, %s14
        %p206 = scmp.lt.s32.totalorder %s205, 3
        %s207 = scalar_select %p206, %s205, 3
        %s208 = scalar_lea.vmem %s3, %s207
        %s209 = smul.u32 2, %s14
        %v211 = vld [vmem:[%s184] sm:$0xff]
        %v212 = vld [vmem:[%s184 + $0x8] sm:$0xff]
        %v213 = vld [vmem:[%s1] sm:$0xf]
        %v214 = vld [vmem:[%s1 + $0x4] sm:$0xf]
        %v215 = vld [vmem:[%s1 + $0x8] sm:$0xf]
        %v216 = vld [vmem:[%s1 + $0xc] sm:$0xf]
        %v217 = vld [vmem:[%s1 + $0x10] sm:$0xf]
        %v218 = vld [vmem:[%s1 + $0x14] sm:$0xf]
        %v219 = vld [vmem:[%s1 + $0x18] sm:$0xf]
        %v220 = vld [vmem:[%s1 + $0x1c] sm:$0xf]
        %v221 = vld [vmem:[%s1 + $0x20] sm:$0xf]
        %v222 = vld [vmem:[%s1 + $0x24] sm:$0xf]
        %v223 = vld [vmem:[%s1 + $0x28] sm:$0xf]
        %v224 = vld [vmem:[%s1 + $0x2c] sm:$0xf]
        %v237 = vunpack.c.l.b16 %v213
        %v238 = vunpack.c.l.b16 %v214
        %v239 = vunpack.c.l.b16 %v215
        %v240 = vunpack.c.l.b16 %v216
        %v241 = vunpack.c.l.b16 %v217
        %v242 = vunpack.c.l.b16 %v218
        %v243 = vunpack.c.l.b16 %v219
        %v244 = vunpack.c.l.b16 %v220
        %v245 = vunpack.c.l.b16 %v221
        %v246 = vunpack.c.l.b16 %v222
        %v247 = vunpack.c.l.b16 %v223
        %v248 = vunpack.c.l.b16 %v224
        %v249 = vpack.c.b16 %v238, %v237
        %v250 = vpack.c.b16 %v240, %v239
        %v251 = vpack.c.b16 %v242, %v241
        %v252 = vpack.c.b16 %v244, %v243
        %v253 = vpack.c.b16 %v246, %v245
        %v254 = vpack.c.b16 %v248, %v247
        %v257 = vunpack.c.l.b16 %v211
        %v258 = vunpack.c.h.b16 %v211
        %v259 = vunpack.c.l.b16 %v212
        %v260 = vunpack.c.h.b16 %v212
        %v261 = vpack.c.b16 %v259, %v257
        %v262 = vpack.c.b16 %v260, %v258
        %vm265 = vcmask 130048
        %v267 = vsel %vm265, %v249, 0
        %v270 = vsel %vm265, %v250, 0
        %v273 = vsel %vm265, %v251, 0
        %v276 = vsel %vm265, %v252, 0
        %v279 = vsel %vm265, %v253, 0
        %v282 = vsel %vm265, %v254, 0
        %284 = vmatprep.subr.bf16.mxu0 %v262
        %285 = vmatpush1.bf16.msra.mxu0 %v261
        %286 = vmatprep.subr.bf16.mxu0 0
        %287 = vmatpush1.bf16.msra.mxu0 0
        %288 = vmatprep.subr.bf16.mxu0 0
        %289 = vmatpush1.bf16.msra.mxu0 0
        %290 = vmatprep.subr.bf16.mxu0 0
        %291 = vmatpush1.bf16.msra.mxu0 0
        %292 = vmatprep.subr.bf16.mxu0 0
        %293 = vmatpush1.bf16.msra.mxu0 0
        %294 = vmatprep.subr.bf16.mxu0 0
        %295 = vmatpush1.bf16.msra.mxu0 0
        %296 = vmatprep.subr.bf16.mxu0 0
        %297 = vmatpush1.bf16.msra.mxu0 0
        %298 = vmatprep.subr.bf16.mxu0 0
        %299 = vmatpush1.bf16.msra.mxu0 0
        %300 = vmatprep.subr.bf16.mxu0 0
        %301 = vmatpush1.bf16.msra.mxu0 0
        %302 = vmatprep.subr.bf16.mxu0 0
        %303 = vmatpush1.bf16.msra.mxu0 0
        %304 = vmatprep.subr.bf16.mxu0 0
        %305 = vmatpush1.bf16.msra.mxu0 0
        %306 = vmatprep.subr.bf16.mxu0 0
        %307 = vmatpush1.bf16.msra.mxu0 0
        %308 = vmatprep.subr.bf16.mxu0 0
        %309 = vmatpush1.bf16.msra.mxu0 0
        %310 = vmatprep.subr.bf16.mxu0 0
        %311 = vmatpush1.bf16.msra.mxu0 0
        %312 = vmatprep.subr.bf16.mxu0 0
        %313 = vmatpush1.bf16.msra.mxu0 0
        %314 = vmatprep.subr.bf16.mxu0 0
        %315 = vmatpush1.bf16.msra.mxu0 0
        %316 = vmatprep.mubr.bf16.mxu0 0
        %317 = vmatmul.mubr.bf16.gmra.mrb[0].mxu0 %v267
        %v318 = vpop.f32.mrb[0].mxu0
        %v319 = vadd.f32 0.0, %v318
        %v320 = vpop.f32.mrb[0].mxu0
        %v321 = vadd.f32 0.0, %v320
        %v322 = vpop.f32.mrb[0].mxu0
        %v323 = vadd.f32 0.0, %v322
        %v324 = vpop.f32.mrb[0].mxu0
        %v325 = vadd.f32 0.0, %v324
        %326 = vmatprep.mubr.bf16.mxu0 0
        %327 = vmatmul.mubr.bf16.gmra.mrb[0].mxu0 %v270
        %v328 = vpop.f32.mrb[0].mxu0
        %v329 = vadd.f32 0.0, %v328
        %v330 = vpop.f32.mrb[0].mxu0
        %v331 = vadd.f32 0.0, %v330
        %v332 = vpop.f32.mrb[0].mxu0
        %v333 = vadd.f32 0.0, %v332
        %v334 = vpop.f32.mrb[0].mxu0
        %v335 = vadd.f32 0.0, %v334
        %336 = vmatprep.mubr.bf16.mxu0 0
        %337 = vmatmul.mubr.bf16.gmra.mrb[0].mxu0 %v273
        %v338 = vpop.f32.mrb[0].mxu0
        %v339 = vadd.f32 0.0, %v338
        %v340 = vpop.f32.mrb[0].mxu0
        %v341 = vadd.f32 0.0, %v340
        %v342 = vpop.f32.mrb[0].mxu0
        %v343 = vadd.f32 0.0, %v342
        %v344 = vpop.f32.mrb[0].mxu0
        %v345 = vadd.f32 0.0, %v344
        %346 = vmatprep.mubr.bf16.mxu0 0
        %347 = vmatmul.mubr.bf16.gmra.mrb[0].mxu0 %v276
        %v348 = vpop.f32.mrb[0].mxu0
        %v349 = vadd.f32 0.0, %v348
        %v350 = vpop.f32.mrb[0].mxu0
        %v351 = vadd.f32 0.0, %v350
        %v352 = vpop.f32.mrb[0].mxu0
        %v353 = vadd.f32 0.0, %v352
        %v354 = vpop.f32.mrb[0].mxu0
        %v355 = vadd.f32 0.0, %v354
        %356 = vmatprep.mubr.bf16.mxu0 0
        %357 = vmatmul.mubr.bf16.gmra.mrb[0].mxu0 %v279
        %v358 = vpop.f32.mrb[0].mxu0
        %v359 = vadd.f32 0.0, %v358
        %v360 = vpop.f32.mrb[0].mxu0
        %v361 = vadd.f32 0.0, %v360
        %v362 = vpop.f32.mrb[0].mxu0
        %v363 = vadd.f32 0.0, %v362
        %v364 = vpop.f32.mrb[0].mxu0
        %v365 = vadd.f32 0.0, %v364
        %366 = vmatprep.mubr.bf16.mxu0 0
        %367 = vmatmul.mubr.bf16.gmra.mrb[0].mxu0 %v282
        %v368 = vpop.f32.mrb[0].mxu0
        %v369 = vadd.f32 0.0, %v368
        %v370 = vpop.f32.mrb[0].mxu0
        %v371 = vadd.f32 0.0, %v370
        %v372 = vpop.f32.mrb[0].mxu0
        %v373 = vadd.f32 0.0, %v372
        %v374 = vpop.f32.mrb[0].mxu0
        %v375 = vadd.f32 0.0, %v374
        %376 = vdwg.mxu0
        %v377 = vmax.f32 %v319, %v329
        %v378 = vmax.f32 %v323, %v333
        %v379 = vmax.f32 %v377, %v339
        %v380 = vmax.f32 %v378, %v343
        %v381 = vmax.f32 %v379, %v349
        %v382 = vmax.f32 %v380, %v353
        %v383 = vmax.f32 %v381, %v359
        %v384 = vmax.f32 %v382, %v363
        %v385 = vmax.f32 %v383, %v369
        %v386 = vmax.f32 %v384, %v373
        %v387 = vmax.f32 %v385, %v386
        %v388 = vrot.slane %v387, 4
        %v389 = vmax.f32 %v387, %v388
        %v390 = vrot.slane %v389, 2
        %v391 = vmax.f32 %v389, %v390
        %v392 = vrot.slane %v391, 1
        %v393 = vmax.f32 %v391, %v392
        %v394 = vmax.f32 %v321, %v331
        %v395 = vmax.f32 %v325, %v335
        %v396 = vmax.f32 %v394, %v341
        %v397 = vmax.f32 %v395, %v345
        %v398 = vmax.f32 %v396, %v351
        %v399 = vmax.f32 %v397, %v355
        %v400 = vmax.f32 %v398, %v361
        %v401 = vmax.f32 %v399, %v365
        %v402 = vmax.f32 %v400, %v371
        %v403 = vmax.f32 %v401, %v375
        %v404 = vmax.f32 %v402, %v403
        %v405 = vrot.slane %v404, 4
        %v406 = vmax.f32 %v404, %v405
        %v407 = vrot.slane %v406, 2
        %v408 = vmax.f32 %v406, %v407
        %v409 = vrot.slane %v408, 1
        %v410 = vmax.f32 %v408, %v409
        %vm411 = vcmp.ge.f32.partialorder %v319, %v393
        %vm412 = vcmp.ge.f32.partialorder %v321, %v410
        %vm413 = vcmp.ge.f32.partialorder %v323, %v393
        %vm414 = vcmp.ge.f32.partialorder %v325, %v410
        %vm415 = vcmp.ge.f32.partialorder %v329, %v393
        %vm416 = vcmp.ge.f32.partialorder %v331, %v410
        %vm417 = vcmp.ge.f32.partialorder %v333, %v393
        %vm418 = vcmp.ge.f32.partialorder %v335, %v410
        %vm419 = vcmp.ge.f32.partialorder %v339, %v393
        %vm420 = vcmp.ge.f32.partialorder %v341, %v410
        %vm421 = vcmp.ge.f32.partialorder %v343, %v393
        %vm422 = vcmp.ge.f32.partialorder %v345, %v410
        %vm423 = vcmp.ge.f32.partialorder %v349, %v393
        %vm424 = vcmp.ge.f32.partialorder %v351, %v410
        %vm425 = vcmp.ge.f32.partialorder %v353, %v393
        %vm426 = vcmp.ge.f32.partialorder %v355, %v410
        %vm427 = vcmp.ge.f32.partialorder %v359, %v393
        %vm428 = vcmp.ge.f32.partialorder %v361, %v410
        %vm429 = vcmp.ge.f32.partialorder %v363, %v393
        %vm430 = vcmp.ge.f32.partialorder %v365, %v410
        %vm431 = vcmp.ge.f32.partialorder %v369, %v393
        %vm432 = vcmp.ge.f32.partialorder %v371, %v410
        %vm433 = vcmp.ge.f32.partialorder %v373, %v393
        %vm434 = vcmp.ge.f32.partialorder %v375, %v410
        %v435 = vld [vmem:[%s2] sm:$0xff]
        %v436 = vld [vmem:[%s2 + $0x8] sm:$0xff]
        %v437 = vld [vmem:[%s2 + $0x10] sm:$0xff]
        %v438 = vld [vmem:[%s2 + $0x18] sm:$0xff]
        %v439 = vld [vmem:[%s2 + $0x20] sm:$0xff]
        %v440 = vld [vmem:[%s2 + $0x28] sm:$0xff]
        %v441 = vld [vmem:[%s2 + $0x30] sm:$0xff]
        %v442 = vld [vmem:[%s2 + $0x38] sm:$0xff]
        %v443 = vld [vmem:[%s2 + $0x40] sm:$0xff]
        %v444 = vld [vmem:[%s2 + $0x48] sm:$0xff]
        %v445 = vld [vmem:[%s2 + $0x50] sm:$0xff]
        %v446 = vld [vmem:[%s2 + $0x58] sm:$0xff]
        %447 = vset.pattern.permute.xlu0 0
        %448 = vperm.xlu0 %447, %v435
        %v449 = vpop.permute.xlu0 %448
        %450 = vset.pattern.permute.xlu0 0
        %451 = vperm.xlu0 %450, %v436
        %v452 = vpop.permute.xlu0 %451
        %453 = vset.pattern.permute.xlu0 0
        %454 = vperm.xlu0 %453, %v437
        %v455 = vpop.permute.xlu0 %454
        %456 = vset.pattern.permute.xlu0 0
        %457 = vperm.xlu0 %456, %v438
        %v458 = vpop.permute.xlu0 %457
        %459 = vset.pattern.permute.xlu0 0
        %460 = vperm.xlu0 %459, %v439
        %v461 = vpop.permute.xlu0 %460
        %462 = vset.pattern.permute.xlu0 0
        %463 = vperm.xlu0 %462, %v440
        %v464 = vpop.permute.xlu0 %463
        %465 = vset.pattern.permute.xlu0 0
        %466 = vperm.xlu0 %465, %v441
        %v467 = vpop.permute.xlu0 %466
        %468 = vset.pattern.permute.xlu0 0
        %469 = vperm.xlu0 %468, %v442
        %v470 = vpop.permute.xlu0 %469
        %471 = vset.pattern.permute.xlu0 0
        %472 = vperm.xlu0 %471, %v443
        %v473 = vpop.permute.xlu0 %472
        %474 = vset.pattern.permute.xlu0 0
        %475 = vperm.xlu0 %474, %v444
        %v476 = vpop.permute.xlu0 %475
        %477 = vset.pattern.permute.xlu0 0
        %478 = vperm.xlu0 %477, %v445
        %v479 = vpop.permute.xlu0 %478
        %480 = vset.pattern.permute.xlu0 0
        %481 = vperm.xlu0 %480, %v446
        %v482 = vpop.permute.xlu0 %481
        %v483 = vsel %vm411, %v449, 1073741824
        %v484 = vsel %vm412, %v449, 1073741824
        %v485 = vsel %vm413, %v452, 1073741824
        %v486 = vsel %vm414, %v452, 1073741824
        %v487 = vsel %vm415, %v455, 1073741824
        %v488 = vsel %vm416, %v455, 1073741824
        %v489 = vsel %vm417, %v458, 1073741824
        %v490 = vsel %vm418, %v458, 1073741824
        %v491 = vsel %vm419, %v461, 1073741824
        %v492 = vsel %vm420, %v461, 1073741824
        %v493 = vsel %vm421, %v464, 1073741824
        %v494 = vsel %vm422, %v464, 1073741824
        %v495 = vsel %vm423, %v467, 1073741824
        %v496 = vsel %vm424, %v467, 1073741824
        %v497 = vsel %vm425, %v470, 1073741824
        %v498 = vsel %vm426, %v470, 1073741824
        %v499 = vsel %vm427, %v473, 1073741824
        %v500 = vsel %vm428, %v473, 1073741824
        %v501 = vsel %vm429, %v476, 1073741824
        %v502 = vsel %vm430, %v476, 1073741824
        %v503 = vsel %vm431, %v479, 1073741824
        %v504 = vsel %vm432, %v479, 1073741824
        %v505 = vsel %vm433, %v482, 1073741824
        %v506 = vsel %vm434, %v482, 1073741824
        %vm507 = vcmp.lt.s32.totalorder %v483, %v487
        %v508 = vsel %vm507, %v483, %v487
        %vm509 = vcmp.lt.s32.totalorder %v485, %v489
        %v510 = vsel %vm509, %v485, %v489
        %vm511 = vcmp.lt.s32.totalorder %v508, %v491
        %v512 = vsel %vm511, %v508, %v491
        %vm513 = vcmp.lt.s32.totalorder %v510, %v493
        %v514 = vsel %vm513, %v510, %v493
        %vm515 = vcmp.lt.s32.totalorder %v512, %v495
        %v516 = vsel %vm515, %v512, %v495
        %vm517 = vcmp.lt.s32.totalorder %v514, %v497
        %v518 = vsel %vm517, %v514, %v497
        %vm519 = vcmp.lt.s32.totalorder %v516, %v499
        %v520 = vsel %vm519, %v516, %v499
        %vm521 = vcmp.lt.s32.totalorder %v518, %v501
        %v522 = vsel %vm521, %v518, %v501
        %vm523 = vcmp.lt.s32.totalorder %v520, %v503
        %v524 = vsel %vm523, %v520, %v503
        %vm525 = vcmp.lt.s32.totalorder %v522, %v505
        %v526 = vsel %vm525, %v522, %v505
        %vm527 = vcmp.lt.s32.totalorder %v524, %v526
        %v528 = vsel %vm527, %v524, %v526
        %v529 = vrot.slane %v528, 4
        %vm530 = vcmp.lt.s32.totalorder %v528, %v529
        %v531 = vsel %vm530, %v528, %v529
        %v532 = vrot.slane %v531, 2
        %vm533 = vcmp.lt.s32.totalorder %v531, %v532
        %v534 = vsel %vm533, %v531, %v532
        %v535 = vrot.slane %v534, 1
        %vm536 = vcmp.lt.s32.totalorder %v534, %v535
        %v537 = vsel %vm536, %v534, %v535
        %vm538 = vcmp.lt.s32.totalorder %v484, %v488
        %v539 = vsel %vm538, %v484, %v488
        %vm540 = vcmp.lt.s32.totalorder %v486, %v490
        %v541 = vsel %vm540, %v486, %v490
        %vm542 = vcmp.lt.s32.totalorder %v539, %v492
        %v543 = vsel %vm542, %v539, %v492
        %vm544 = vcmp.lt.s32.totalorder %v541, %v494
        %v545 = vsel %vm544, %v541, %v494
        %vm546 = vcmp.lt.s32.totalorder %v543, %v496
        %v547 = vsel %vm546, %v543, %v496
        %vm548 = vcmp.lt.s32.totalorder %v545, %v498
        %v549 = vsel %vm548, %v545, %v498
        %vm550 = vcmp.lt.s32.totalorder %v547, %v500
        %v551 = vsel %vm550, %v547, %v500
        %vm552 = vcmp.lt.s32.totalorder %v549, %v502
        %v553 = vsel %vm552, %v549, %v502
        %vm554 = vcmp.lt.s32.totalorder %v551, %v504
        %v555 = vsel %vm554, %v551, %v504
        %vm556 = vcmp.lt.s32.totalorder %v553, %v506
        %v557 = vsel %vm556, %v553, %v506
        %vm558 = vcmp.lt.s32.totalorder %v555, %v557
        %v559 = vsel %vm558, %v555, %v557
        %v560 = vrot.slane %v559, 4
        %vm561 = vcmp.lt.s32.totalorder %v559, %v560
        %v562 = vsel %vm561, %v559, %v560
        %v563 = vrot.slane %v562, 2
        %vm564 = vcmp.lt.s32.totalorder %v562, %v563
        %v565 = vsel %vm564, %v562, %v563
        %v566 = vrot.slane %v565, 1
        %vm567 = vcmp.lt.s32.totalorder %v565, %v566
        %v568 = vsel %vm567, %v565, %v566
        %v569 = vand.u32 %v537, 65535
        %v570 = vand.u32 %v568, 65535
        %v571 = vcombine.low %v569, %v570
        %v573 = vunpack.c.l.s4 1966171168
        %v574 = vunpack.c.0.s8 %v573
        %v575 = vlaneseq
        %v576 = vshrl.u32 %v575, 7
        %v577 = vsub.s32 %v574, %v576
        %v578 = vrot.slane %v571, %v577
        %v580 = vunpack.c.l.s4 1966171168
        %v581 = vunpack.c.0.s8 %v580
        %v582 = vlaneseq
        %v583 = vshrl.u32 %v582, 7
        %v584 = vsub.s32 %v581, %v583
        %v585 = vrot.slane %v578, %v584
        %v586 = vlaneseq
        %vm587 = vcmp.ge.s32.totalorder %v586, 0
        %vm588 = vcmp.lt.s32.totalorder %v586, 256
        %vm589 = vmand %vm587, %vm588
        %590 = vst.msk [vmem:[%s208] sm:$0x3] %vm589, %v585
        %s591 = smul.u32 2, %s14
        %p592 = scmp.lt.s32.totalorder %s591, 3
        %s593 = scalar_select %p592, %s591, 3
        %s594 = scalar_lea.vmem %s3, %s593
        // Predicated region
        $region71: #{transposable_sparse.1} parent=65 // pred_check
          %p595 = pneg %p100
        $region72: #{transposable_sparse.1} parent=65 // pred_check_branch
          %597 = sbr.rel (%p595) target = $region74
        $region73: #{transposable_sparse.1} parent=65 // pred_region
          %s598 = smul.u32 2, %s14
        $region74: #{transposable_sparse.1} parent=65 // pred_fallthru
          _
      $region66: #{transposable_sparse.1} parent=5 // pred_fallthru
        _
      %p599 = scmp.le.s32.totalorder 2, %s9
      // Predicated region
      $region75: #{transposable_sparse.1} parent=5 // pred_check
        %p600 = pneg %p599
      $region76: #{transposable_sparse.1} parent=5 // pred_check_branch
        %602 = sbr.rel (%p600) target = $region78
      $region77: #{transposable_sparse.1} parent=5 // pred_region
        %s603 = ssub.s32 %s9, 2
        // Predicated region
        $region79: #{transposable_sparse.1} parent=77 // pred_check
          %p604 = pneg %p106
        $region80: #{transposable_sparse.1} parent=77 // pred_check_branch
          %606 = sbr.rel (%p604) target = $region82
        $region81: #{transposable_sparse.1} parent=77 // pred_region
          %s607 = smul.u32 2, %s15
          %p608 = scmp.lt.s32.totalorder %s607, 3
          %s609 = scalar_select %p608, %s607, 3
          %s610 = scalar_lea.vmem %s3, %s609
        $region82: #{transposable_sparse.1} parent=77 // pred_fallthru
          _
      $region78: #{transposable_sparse.1} parent=5 // pred_fallthru
        _
    $region6: #{transposable_sparse.1} parent=1 // loop_footer
      %s13 = sadd.s32 1, %s9
    $region7: #{transposable_sparse.1} parent=1 // loop_footer_branch
      %8 = sbr.rel target = $region3
    $region8: #{transposable_sparse.1} parent=1 // loop_exit
      _

</llo_original>
